<compile_context>
chip_gen: v7x
topology: tpu7x:2x2x1
jax: 0.10.0
libtpu: 0.0.40
codegen_flags: <defaults>
</compile_context>

<pallas_src>
import math

import jax
import jax.numpy as jnp
from jax.experimental import pallas as pl
from jax.experimental.pallas import tpu as pltpu


def _round_up(x: int, m: int) -> int:
    return (x + m - 1) // m * m


def _choose_tf(f_pad: int, target: int) -> int:
    """Largest multiple of 128 that divides f_pad and is <= target (>=128)."""
    best = 128
    cand = 128
    while cand <= min(target, f_pad):
        if f_pad % cand == 0:
            best = cand
        cand += 128
    return best


# ----------------------------------------------------------------------------
# Kernels
# ----------------------------------------------------------------------------
def ffn_resident_kernel(x_ref, w1_ref, b1_ref, w2_ref, b2_ref, o_ref):
    """Weight-resident path: full-F fc1 -> relu -> fc2 per row tile."""
    h = jnp.dot(x_ref[...], w1_ref[...], preferred_element_type=jnp.float32)
    h = jnp.maximum(h + b1_ref[...], 0.0)       # bias + ReLU in f32 on the VPU
    # dropout (eval mode) == identity
    y = jnp.dot(h.astype(w2_ref.dtype), w2_ref[...],
                preferred_element_type=jnp.float32)
    o_ref[...] = (y + b2_ref[...]).astype(o_ref.dtype)


def ffn_streamed_kernel_f32out(x_ref, w1_ref, b1_ref, w2_ref, b2_ref, o_ref):
    """Streamed path, f32 output: accumulate directly in the output block."""
    j = pl.program_id(1)  # hidden-dim (reduction) axis, last in grid
    h = jnp.dot(x_ref[...], w1_ref[...], preferred_element_type=jnp.float32)
    h = jnp.maximum(h + b1_ref[...], 0.0)
    partial = jnp.dot(h.astype(w2_ref.dtype), w2_ref[...],
                      preferred_element_type=jnp.float32)

    @pl.when(j == 0)
    def _():
        o_ref[...] = partial            # overwrite on first step (no zero-init pass)

    @pl.when(j > 0)
    def _():
        o_ref[...] += partial

    @pl.when(j == pl.num_programs(1) - 1)
    def _():
        o_ref[...] += b2_ref[...]


def ffn_streamed_kernel_scratch(x_ref, w1_ref, b1_ref, w2_ref, b2_ref, o_ref, acc_ref):
    """Streamed path, non-f32 output: accumulate in an f32 VMEM scratch."""
    j = pl.program_id(1)
    h = jnp.dot(x_ref[...], w1_ref[...], preferred_element_type=jnp.float32)
    h = jnp.maximum(h + b1_ref[...], 0.0)
    partial = jnp.dot(h.astype(w2_ref.dtype), w2_ref[...],
                      preferred_element_type=jnp.float32)

    @pl.when(j == 0)
    def _():
        acc_ref[...] = partial

    @pl.when(j > 0)
    def _():
        acc_ref[...] += partial

    @pl.when(j == pl.num_programs(1) - 1)
    def _():
        o_ref[...] = (acc_ref[...] + b2_ref[...]).astype(o_ref.dtype)


# ----------------------------------------------------------------------------
# Wrappers
# ----------------------------------------------------------------------------
def prepare_ffn_params(w1, b1, w2, b2, compute_dtype=jnp.bfloat16):
    """Pad + cast FFN params ONCE (hoist out of the per-call path; cache result).

    w1: (E, F), b1: (F,)  fc_1 params (already transposed vs nn.Linear.weight)
    w2: (F, E), b2: (E,)  fc_2 params
    """
    E, F = w1.shape
    assert b1.shape == (F,) and w2.shape == (F, E) and b2.shape == (E,)
    cdt = jnp.dtype(compute_dtype)
    E_pad = _round_up(E, 128)
    F_pad = _round_up(F, 128)   # F padded only to 128 (tf chosen as a divisor later)
    if (E, F) == (E_pad, F_pad) and w1.dtype == cdt and w2.dtype == cdt:
        w1p, w2p = w1, w2
    else:
        w1p = jnp.zeros((E_pad, F_pad), cdt).at[:E, :F].set(w1.astype(cdt))
        w2p = jnp.zeros((F_pad, E_pad), cdt).at[:F, :E].set(w2.astype(cdt))
    b1p = jnp.zeros((1, F_pad), jnp.float32).at[0, :F].set(b1.astype(jnp.float32))
    b2p = jnp.zeros((1, E_pad), jnp.float32).at[0, :E].set(b2.astype(jnp.float32))
    return dict(w1=w1p, b1=b1p, w2=w2p, b2=b2p,
                E=E, F=F, E_pad=E_pad, F_pad=F_pad, compute_dtype=cdt)


def position_wise_ffn_prepared(x, params, *, force_mode="auto", vmem_limit_bytes=None):
    """Fused FFN forward: fc2(relu(fc1(x))); dropout in eval mode (identity)."""
    cdt = params["compute_dtype"]
    E, F = params["E"], params["F"]
    E_pad, F_pad = params["E_pad"], params["F_pad"]
    w1p, b1p, w2p, b2p = params["w1"], params["b1"], params["w2"], params["b2"]

    orig_shape = x.shape
    assert orig_shape[-1] == E, "last dim of x must equal embed_dim"
    M = int(math.prod(orig_shape[:-1])) if len(orig_shape) > 1 else 1
    x2 = x.reshape(M, E)
    out_dtype = x.dtype
    out_item = jnp.dtype(out_dtype).itemsize
    c_item = cdt.itemsize

    # ---- generation-aware VMEM budget ----
    if vmem_limit_bytes is None:
        try:
            cap = int(pltpu.get_tpu_info().vmem_capacity_bytes)
        except Exception:
            cap = 64 << 20  # conservative (v7x-sized) fallback
        vmem_limit_bytes = min(int(cap * 0.80), cap - (8 << 20))
    vmem_limit_bytes = int(vmem_limit_bytes)
    budget = int(vmem_limit_bytes * 0.90)          # headroom for compiler temps
    small_vmem = vmem_limit_bytes <= (56 << 20)    # v7x-class (64 MiB physical / TC)

    # ---- row-tile selection ----
    if M >= 256:
        tm = min(512, _round_up(M, 256))           # 256-multiples feed the MXU cleanly
    else:
        tm = max(16, _round_up(M, 16))             # bf16 sublane pack, avoid masked layouts
    if small_vmem and M >= 512:
        # v7x: keep >= 2 row tiles so both TensorCores get work on the parallel axis.
        tm = min(tm, max(256, (_round_up(M, 256) // 2) // 256 * 256))

    # ---- resident fast path: both weight matrices stay in VMEM across row tiles ----
    def _resident_bytes(tm_):
        return (2 * 2 * E_pad * F_pad * c_item            # W1 + W2 (buffer-conservative)
                + 2 * tm_ * E_pad * (c_item + out_item)   # x / out blocks (double-buffered)
                + 2 * 2 * (F_pad + E_pad) * 4             # biases
                + tm_ * F_pad * (4 + c_item))             # fc1 activations (f32 + cast)

    if force_mode == "resident":
        use_resident = True
    elif force_mode == "streamed":
        use_resident = False
    else:
        use_resident = _resident_bytes(tm) <= budget

    # ---- streamed path tiles: hidden dim F tiled as the LAST ("arbitrary") axis ----
    tf = F_pad
    if not use_resident:
        tf = _choose_tf(F_pad, 256 if small_vmem else 512)  # shrink tf (not tm) on v7x
        use_scratch = out_dtype != jnp.float32

        def _streamed_bytes(tm_, tf_):
            return (2 * tm_ * E_pad * (c_item + out_item)
                    + 2 * (E_pad * tf_ + tf_ * E_pad) * c_item
                    + 2 * 2 * (tf_ + E_pad) * 4
                    + (tm_ * E_pad * 4 if use_scratch else 0)
                    + tm_ * tf_ * (4 + c_item))

        while _streamed_bytes(tm, tf) > budget and tm > 256:
            tm = max(256, _round_up(tm // 2, 256))
        while _streamed_bytes(tm, tf) > budget and tf > 128:
            tf = _choose_tf(F_pad, max(128, tf // 2))

    M_pad = _round_up(M, tm)
    grid_m = M_pad // tm

    # ---- pad / cast activations only when needed ----
    if M_pad == M and E_pad == E and x2.dtype == cdt:
        xp = x2
    else:
        xp = jnp.zeros((M_pad, E_pad), cdt).at[:M, :E].set(x2.astype(cdt))

    flops = 4 * M_pad * E_pad * F_pad

    if use_resident:
        kernel = ffn_resident_kernel
        grid = (grid_m,)
        in_specs = [
            pl.BlockSpec((tm, E_pad),    lambda i: (i, 0)),   # x row tile
            pl.BlockSpec((E_pad, F_pad), lambda i: (0, 0)),   # W1 (resident, DMA'd once)
            pl.BlockSpec((1, F_pad),     lambda i: (0, 0)),   # b1
            pl.BlockSpec((F_pad, E_pad), lambda i: (0, 0)),   # W2 (resident)
            pl.BlockSpec((1, E_pad),     lambda i: (0, 0)),   # b2
        ]
        out_specs = pl.BlockSpec((tm, E_pad), lambda i: (i, 0))
        scratch_shapes = []
        dim_sem = ("parallel",)
        bytes_accessed = (M_pad * E_pad * (c_item + out_item)
                          + 2 * E_pad * F_pad * c_item + (F_pad + E_pad) * 4)
    else:
        grid = (grid_m, F_pad // tf)
        in_specs = [
            pl.BlockSpec((tm, E_pad), lambda i, j: (i, 0)),   # x row tile
            pl.BlockSpec((E_pad, tf), lambda i, j: (0, j)),   # W1 slice
            pl.BlockSpec((1, tf),     lambda i, j: (0, j)),   # b1 slice
            pl.BlockSpec((tf, E_pad), lambda i, j: (j, 0)),   # W2 slice
            pl.BlockSpec((1, E_pad),  lambda i, j: (0, 0)),   # b2 (tiny, const)
        ]
        out_specs = pl.BlockSpec((tm, E_pad), lambda i, j: (i, 0))
        if out_dtype == jnp.float32:
            kernel = ffn_streamed_kernel_f32out
            scratch_shapes = []                               # accumulate in o_ref
        else:
            kernel = ffn_streamed_kernel_scratch
            scratch_shapes = [pltpu.VMEM((tm, E_pad), jnp.float32)]
        dim_sem = ("parallel", "arbitrary")
        bytes_accessed = (M_pad * E_pad * (c_item + out_item)
                          + grid_m * (2 * E_pad * F_pad * c_item + (F_pad + E_pad) * 4))

    cost = pl.CostEstimate(flops=int(flops), transcendentals=0,
                           bytes_accessed=int(bytes_accessed))

    out = pl.pallas_call(
        kernel,
        out_shape=jax.ShapeDtypeStruct((M_pad, E_pad), out_dtype),
        grid_spec=pltpu.PrefetchScalarGridSpec(
            num_scalar_prefetch=0,
            grid=grid,
            in_specs=in_specs,
            out_specs=out_specs,
            scratch_shapes=scratch_shapes),
        compiler_params=pltpu.CompilerParams(
            dimension_semantics=dim_sem,
            vmem_limit_bytes=vmem_limit_bytes),
        cost_estimate=cost,
    )(xp, w1p, b1p, w2p, b2p)

    return out[:M, :E].reshape(orig_shape)


def position_wise_ffn(x, w1, b1, w2, b2, *, compute_dtype=jnp.bfloat16,
                      force_mode="auto", vmem_limit_bytes=None):
    """One-shot convenience wrapper (prefer prepare_ffn_params + *_prepared)."""
    params = prepare_ffn_params(w1, b1, w2, b2, compute_dtype=compute_dtype)
    return position_wise_ffn_prepared(x, params, force_mode=force_mode,
                                      vmem_limit_bytes=vmem_limit_bytes)


# ----------------------------------------------------------------------------
# Demo / self-test
# ----------------------------------------------------------------------------
if __name__ == "__main__":
    key = jax.random.PRNGKey(0)

    def make_params(k, embed_dim, d_ff):
        k1, kb1, k2, kb2 = jax.random.split(k, 4)
        bound1 = 1.0 / math.sqrt(embed_dim)
        w1 = jax.random.uniform(k1, (embed_dim, d_ff), minval=-bound1, maxval=bound1,
                                dtype=jnp.float32)
        b1 = jax.random.uniform(kb1, (d_ff,), minval=-bound1, maxval=bound1,
                                dtype=jnp.float32)
        bound2 = 1.0 / math.sqrt(d_ff)
        w2 = jax.random.uniform(k2, (d_ff, embed_dim), minval=-bound2, maxval=bound2,
                                dtype=jnp.float32)
        b2 = jax.random.uniform(kb2, (embed_dim,), minval=-bound2, maxval=bound2,
                                dtype=jnp.float32)
        return w1, b1, w2, b2

    def ref_ffn(xx, w1, b1, w2, b2):
        x2 = xx.reshape(-1, xx.shape[-1]).astype(jnp.float32)
        y = jnp.maximum(x2 @ w1 + b1, 0.0) @ w2 + b2
        return y.reshape(xx.shape)

    # --- test 1: small shapes, auto mode (weight-resident fast path) ---
    kx, kp, key = jax.random.split(key, 3)
    batch, seq, embed_dim, d_ff = 2, 8, 32, 64
    x = jax.random.normal(kx, (batch, seq, embed_dim), dtype=jnp.float32)
    w1, b1, w2, b2 = make_params(kp, embed_dim, d_ff)
    params = prepare_ffn_params(w1, b1, w2, b2)
    out = position_wise_ffn_prepared(x, params)
    jax.block_until_ready(out)
    ref = ref_ffn(x, w1, b1, w2, b2)
    assert out.shape == ref.shape and out.dtype == x.dtype
    assert jnp.allclose(out, ref, atol=3e-2, rtol=3e-2), "resident path mismatch"

    # --- test 2: forced streamed path (hidden dim tiled, f32 accumulate-in-output) ---
    kx, kp, key = jax.random.split(key, 3)
    batch, seq, embed_dim, d_ff = 2, 64, 32, 1024
    x = jax.random.normal(kx, (batch, seq, embed_dim), dtype=jnp.float32)
    w1, b1, w2, b2 = make_params(kp, embed_dim, d_ff)
    params = prepare_ffn_params(w1, b1, w2, b2)
    out = position_wise_ffn_prepared(x, params, force_mode="streamed")
    jax.block_until_ready(out)
    ref = ref_ffn(x, w1, b1, w2, b2)
    assert jnp.allclose(out, ref, atol=5e-2, rtol=5e-2), "streamed (f32) path mismatch"

    # --- test 3: forced streamed path, bf16 activations (f32 VMEM scratch accumulator) ---
    xb = x.astype(jnp.bfloat16)
    out_b = position_wise_ffn_prepared(xb, params, force_mode="streamed")
    jax.block_until_ready(out_b)
    ref_b = ref_ffn(xb.astype(jnp.float32), w1, b1, w2, b2)
    assert out_b.dtype == jnp.bfloat16
    assert jnp.allclose(out_b.astype(jnp.float32), ref_b, atol=1e-1, rtol=1e-1), \
        "streamed (bf16) path mismatch"

    print("KERNEL_OK")
</pallas_src>

<mosaic_0001>
module attributes {stable_mosaic.version = 11 : i64} {
  func.func @ffn_resident_kernel(%arg0: i32, %arg1: memref<16x128xbf16, #tpu.memory_space<vmem>>, %arg2: memref<128x128xbf16, #tpu.memory_space<vmem>>, %arg3: memref<1x128xf32, #tpu.memory_space<vmem>>, %arg4: memref<128x128xbf16, #tpu.memory_space<vmem>>, %arg5: memref<1x128xf32, #tpu.memory_space<vmem>>, %arg6: memref<16x128xf32, #tpu.memory_space<vmem>>) attributes {dimension_semantics = [#tpu.dimension_semantics<parallel>], iteration_bounds = array<i64: 1>, scalar_prefetch = 0 : i64, scratch_operands = 0 : i64, tpu.core_type = #tpu.core_type<tc>, window_params = [{transform_indices = @transform_0, window_bounds = array<i64: 16, 128>}, {pipeline_mode = #tpu.pipeline_mode<synchronous>, transform_indices = @transform_1, window_bounds = array<i64: 128, 128>}, {pipeline_mode = #tpu.pipeline_mode<synchronous>, transform_indices = @transform_2, window_bounds = array<i64: 1, 128>}, {pipeline_mode = #tpu.pipeline_mode<synchronous>, transform_indices = @transform_3, window_bounds = array<i64: 128, 128>}, {pipeline_mode = #tpu.pipeline_mode<synchronous>, transform_indices = @transform_4, window_bounds = array<i64: 1, 128>}, {transform_indices = @transform_5, window_bounds = array<i64: 16, 128>}]} {
    %c0 = arith.constant 0 : index
    %c0_0 = arith.constant 0 : index
    %0 = vector.load %arg1[%c0, %c0_0] : memref<16x128xbf16, #tpu.memory_space<vmem>>, vector<16x128xbf16>
    %c0_1 = arith.constant 0 : index
    %c0_2 = arith.constant 0 : index
    %1 = vector.load %arg2[%c0_1, %c0_2] : memref<128x128xbf16, #tpu.memory_space<vmem>>, vector<128x128xbf16>
    %cst = arith.constant dense<0.000000e+00> : vector<16x128xf32>
    %2 = tpu.matmul %0, %1, %cst {dimension_numbers = #tpu.dot_dimension_numbers<[1], [0], [0], [1], [0, 0, 1, 1], [], []>} : vector<16x128xbf16>, vector<128x128xbf16>, vector<16x128xf32> -> vector<16x128xf32>
    %c0_3 = arith.constant 0 : index
    %c0_4 = arith.constant 0 : index
    %3 = vector.load %arg3[%c0_3, %c0_4] : memref<1x128xf32, #tpu.memory_space<vmem>>, vector<1x128xf32>
    %4 = vector.broadcast %3 : vector<1x128xf32> to vector<16x128xf32>
    %5 = arith.addf %2, %4 : vector<16x128xf32>
    %cst_5 = arith.constant 0.000000e+00 : f32
    %6 = vector.broadcast %cst_5 : f32 to vector<16x128xf32>
    %7 = arith.maximumf %5, %6 : vector<16x128xf32>
    %8 = arith.truncf %7 : vector<16x128xf32> to vector<16x128xbf16>
    %c0_6 = arith.constant 0 : index
    %c0_7 = arith.constant 0 : index
    %9 = vector.load %arg4[%c0_6, %c0_7] : memref<128x128xbf16, #tpu.memory_space<vmem>>, vector<128x128xbf16>
    %cst_8 = arith.constant dense<0.000000e+00> : vector<16x128xf32>
    %10 = tpu.matmul %8, %9, %cst_8 {dimension_numbers = #tpu.dot_dimension_numbers<[1], [0], [0], [1], [0, 0, 1, 1], [], []>} : vector<16x128xbf16>, vector<128x128xbf16>, vector<16x128xf32> -> vector<16x128xf32>
    %c0_9 = arith.constant 0 : index
    %c0_10 = arith.constant 0 : index
    %11 = vector.load %arg5[%c0_9, %c0_10] : memref<1x128xf32, #tpu.memory_space<vmem>>, vector<1x128xf32>
    %12 = vector.broadcast %11 : vector<1x128xf32> to vector<16x128xf32>
    %13 = arith.addf %10, %12 : vector<16x128xf32>
    %c0_11 = arith.constant 0 : index
    %c0_12 = arith.constant 0 : index
    %14 = vector.load %arg6[%c0_11, %c0_12] : memref<16x128xf32, #tpu.memory_space<vmem>>, vector<16x128xf32>
    tpu.vector_store %arg6[%c0_11, %c0_12], %13 {strides = array<i32>} : memref<16x128xf32, #tpu.memory_space<vmem>>, vector<16x128xf32>,
    return
  }
  func.func @transform_0(%arg0: i32) -> (i32, i32) {
    %c0_i32 = arith.constant 0 : i32
    %c0_i32_0 = arith.constant 0 : i32
    return %arg0, %c0_i32 : i32, i32
  }
  func.func @transform_1(%arg0: i32) -> (i32, i32) {
    %c0_i32 = arith.constant 0 : i32
    %c0_i32_0 = arith.constant 0 : i32
    %c0_i32_1 = arith.constant 0 : i32
    return %c0_i32, %c0_i32_0 : i32, i32
  }
  func.func @transform_2(%arg0: i32) -> (i32, i32) {
    %c0_i32 = arith.constant 0 : i32
    %c0_i32_0 = arith.constant 0 : i32
    %c0_i32_1 = arith.constant 0 : i32
    return %c0_i32, %c0_i32_0 : i32, i32
  }
  func.func @transform_3(%arg0: i32) -> (i32, i32) {
    %c0_i32 = arith.constant 0 : i32
    %c0_i32_0 = arith.constant 0 : i32
    %c0_i32_1 = arith.constant 0 : i32
    return %c0_i32, %c0_i32_0 : i32, i32
  }
  func.func @transform_4(%arg0: i32) -> (i32, i32) {
    %c0_i32 = arith.constant 0 : i32
    %c0_i32_0 = arith.constant 0 : i32
    %c0_i32_1 = arith.constant 0 : i32
    return %c0_i32, %c0_i32_0 : i32, i32
  }
  func.func @transform_5(%arg0: i32) -> (i32, i32) {
    %c0_i32 = arith.constant 0 : i32
    %c0_i32_0 = arith.constant 0 : i32
    return %arg0, %c0_i32 : i32, i32
  }
}

</mosaic_0001>

<llo_original>
// kernel: tpu_custom_call.1
$region0: #{tpu_custom_call.1}
  #allocation0 [shape = 'u32[]', space=smem, size = 0x4, offset = 0x4, fixed_abs, tag = 'smem constant byte address 0x4 - core index']
  #allocation1 [shape = 'u32[144,128]{1,0:T(1,128)}', space=vmem, size = 0x12000, scoped, tag = 'internal scratch']
  %s0 = inlined_call_operand.hbm [shape: bf16[16,128], index: 0, kind: input, shape index: {}]
  %s1 = inlined_call_operand.hbm [shape: bf16[128,128], index: 1, kind: input, shape index: {}]
  %s2 = inlined_call_operand.vmem [shape: f32[1,128], index: 2, kind: input, shape index: {}]
  %s3 = inlined_call_operand.hbm [shape: bf16[128,128], index: 3, kind: input, shape index: {}]
  %s4 = inlined_call_operand.vmem [shape: f32[1,128], index: 4, kind: input, shape index: {}]
  %s5 = inlined_call_operand.hbm [shape: f32[16,128], index: 5, kind: output, shape index: {}]
  %s6 = sld [smem:[#allocation0]]
  $region42: #{tpu_custom_call.1} parent=0
    _
  %s8 = ssub.s32 1, %s6
  %s9 = scalar_select 0, %s8, %s6
  $region1: #{tpu_custom_call.1} parent=0
    #allocation2 [shape = 'u8[4096]{0}', space=vmem, size = 0x1000, scoped, tag = 'input window, operand 0, single buffered']
    #allocation3 [shape = 's32[1]{0}', space=sflag, size = 0x4, scoped, tag = 'scoped memory for tpu_custom_call.1']
    #allocation4 [shape = 's32[1]{0}', space=sflag, size = 0x4, scoped, tag = 'scoped memory for tpu_custom_call.1']
    #allocation5 [shape = 'u8[32768]{0}', space=vmem, size = 0x8000, scoped, tag = 'input window, operand 1, single buffered']
    #allocation6 [shape = 's32[1]{0}', space=sflag, size = 0x4, scoped, tag = 'scoped memory for tpu_custom_call.1']
    #allocation7 [shape = 'u8[32768]{0}', space=vmem, size = 0x8000, scoped, tag = 'input window, operand 3, single buffered']
    #allocation8 [shape = 'u8[8192]{0}', space=vmem, size = 0x2000, scoped, tag = 'output window, operand 0, single buffered']
    %10 = vsyncpa [#allocation3], 0
    %11 = vsyncpa [#allocation6], 0
    %12 = vsyncpa [#allocation4], 0
    // Predicated region
    $region2: #{tpu_custom_call.1} parent=1 // pred_check
      _
    $region3: #{tpu_custom_call.1} parent=1 // pred_check_branch
      %14 = sbr.rel (0) target = $region5
    $region4: #{tpu_custom_call.1} parent=1 // pred_region
      %s16 = ssub.s32 128, 128
      %17 = vsyncadd [#allocation3], %s16
      %s18 = sshll.u32 [#allocation2], 4
      %s19 = int_to_ptr.vmem [resolvable:$true] %s18
      %24 = dma.hbm_to_vmem [thread:$0]  %s0, 128, %s19, [#allocation3], 64, 64, 4
    $region5: #{tpu_custom_call.1} parent=1 // pred_fallthru
      _
    // Predicated region
    $region6: #{tpu_custom_call.1} parent=1 // pred_check
      _
    $region7: #{tpu_custom_call.1} parent=1 // pred_check_branch
      %26 = sbr.rel (0) target = $region9
    $region8: #{tpu_custom_call.1} parent=1 // pred_region
      %s28 = ssub.s32 1024, 1024
      %29 = vsyncadd [#allocation6], %s28
      %s30 = sshll.u32 [#allocation5], 4
      %s31 = int_to_ptr.vmem [resolvable:$true] %s30
      %36 = dma.hbm_to_vmem [thread:$0]  %s1, 1024, %s31, [#allocation6], 64, 64, 4
    $region9: #{tpu_custom_call.1} parent=1 // pred_fallthru
      _
    // Predicated region
    $region10: #{tpu_custom_call.1} parent=1 // pred_check
      _
    $region11: #{tpu_custom_call.1} parent=1 // pred_check_branch
      %38 = sbr.rel (0) target = $region13
    $region12: #{tpu_custom_call.1} parent=1 // pred_region
      _
    $region13: #{tpu_custom_call.1} parent=1 // pred_fallthru
      _
    // Predicated region
    $region14: #{tpu_custom_call.1} parent=1 // pred_check
      _
    $region15: #{tpu_custom_call.1} parent=1 // pred_check_branch
      %40 = sbr.rel (0) target = $region17
    $region16: #{tpu_custom_call.1} parent=1 // pred_region
      %s42 = ssub.s32 1024, 1024
      %43 = vsyncadd [#allocation6], %s42
      %s44 = sshll.u32 [#allocation7], 4
      %s45 = int_to_ptr.vmem [resolvable:$true] %s44
      %50 = dma.hbm_to_vmem [thread:$0]  %s3, 1024, %s45, [#allocation6], 64, 64, 4
    $region17: #{tpu_custom_call.1} parent=1 // pred_fallthru
      _
    // Predicated region
    $region18: #{tpu_custom_call.1} parent=1 // pred_check
      _
    $region19: #{tpu_custom_call.1} parent=1 // pred_check_branch
      %52 = sbr.rel (0) target = $region21
    $region20: #{tpu_custom_call.1} parent=1 // pred_region
      _
    $region21: #{tpu_custom_call.1} parent=1 // pred_fallthru
      _
    // Predicated region
    $region22: #{tpu_custom_call.1} parent=1 // pred_check
      _
    $region23: #{tpu_custom_call.1} parent=1 // pred_check_branch
      %54 = sbr.rel (0) target = $region25
    $region24: #{tpu_custom_call.1} parent=1 // pred_region
      %55 = dma.done [#allocation3], 128
    $region25: #{tpu_custom_call.1} parent=1 // pred_fallthru
      _
    // Predicated region
    $region26: #{tpu_custom_call.1} parent=1 // pred_check
      _
    $region27: #{tpu_custom_call.1} parent=1 // pred_check_branch
      %57 = sbr.rel (0) target = $region29
    $region28: #{tpu_custom_call.1} parent=1 // pred_region
      %58 = dma.done [#allocation6], 1024
    $region29: #{tpu_custom_call.1} parent=1 // pred_fallthru
      _
    // Predicated region
    $region30: #{tpu_custom_call.1} parent=1 // pred_check
      _
    $region31: #{tpu_custom_call.1} parent=1 // pred_check_branch
      %60 = sbr.rel (0) target = $region33
    $region32: #{tpu_custom_call.1} parent=1 // pred_region
      %61 = dma.done [#allocation6], 1024
    $region33: #{tpu_custom_call.1} parent=1 // pred_fallthru
      _
    %v63 = vld [vmem:[#allocation2] sm:$0xf]
    %v64 = vld [vmem:[#allocation2 + $0x4] sm:$0xf]
    %v65 = vld [vmem:[#allocation5] sm:$0xf]
    %v66 = vld [vmem:[#allocation5 + $0x4] sm:$0xf]
    %v67 = vld [vmem:[#allocation5 + $0x8] sm:$0xf]
    %v68 = vld [vmem:[#allocation5 + $0xc] sm:$0xf]
    %v69 = vld [vmem:[#allocation5 + $0x10] sm:$0xf]
    %v70 = vld [vmem:[#allocation5 + $0x14] sm:$0xf]
    %v71 = vld [vmem:[#allocation5 + $0x18] sm:$0xf]
    %v72 = vld [vmem:[#allocation5 + $0x1c] sm:$0xf]
    %v73 = vld [vmem:[#allocation5 + $0x20] sm:$0xf]
    %v74 = vld [vmem:[#allocation5 + $0x24] sm:$0xf]
    %v75 = vld [vmem:[#allocation5 + $0x28] sm:$0xf]
    %v76 = vld [vmem:[#allocation5 + $0x2c] sm:$0xf]
    %v77 = vld [vmem:[#allocation5 + $0x30] sm:$0xf]
    %v78 = vld [vmem:[#allocation5 + $0x34] sm:$0xf]
    %v79 = vld [vmem:[#allocation5 + $0x38] sm:$0xf]
    %v80 = vld [vmem:[#allocation5 + $0x3c] sm:$0xf]
    %v81 = vld [vmem:[%s2] sm:$0x1]
    %v83 = vlaneseq
    %v84 = vshrl.u32 %v83, 7
    %v85 = vsub.s32 0, %v84
    %v86 = vrot.slane %v81, %v85
    %v90 = vunpack.c.l.b16 %v63
    %v91 = vunpack.c.l.b16 %v64
    %v92 = vpack.c.b16 %v91, %v90
    %v110 = vunpack.c.l.b16 %v65
    %v111 = vunpack.c.l.b16 %v66
    %v112 = vunpack.c.l.b16 %v67
    %v113 = vunpack.c.l.b16 %v68
    %v114 = vunpack.c.l.b16 %v69
    %v115 = vunpack.c.l.b16 %v70
    %v116 = vunpack.c.l.b16 %v71
    %v117 = vunpack.c.l.b16 %v72
    %v118 = vunpack.c.l.b16 %v73
    %v119 = vunpack.c.l.b16 %v74
    %v120 = vunpack.c.l.b16 %v75
    %v121 = vunpack.c.l.b16 %v76
    %v122 = vunpack.c.l.b16 %v77
    %v123 = vunpack.c.l.b16 %v78
    %v124 = vunpack.c.l.b16 %v79
    %v125 = vunpack.c.l.b16 %v80
    %v126 = vpack.c.b16 %v111, %v110
    %v127 = vpack.c.b16 %v113, %v112
    %v128 = vpack.c.b16 %v115, %v114
    %v129 = vpack.c.b16 %v117, %v116
    %v130 = vpack.c.b16 %v119, %v118
    %v131 = vpack.c.b16 %v121, %v120
    %v132 = vpack.c.b16 %v123, %v122
    %v133 = vpack.c.b16 %v125, %v124
    %142 = vmatprep.subr.bf16.mxu0 0
    %143 = vmatpush1.bf16.msra.mxu0 %v126
    %144 = vmatprep.subr.bf16.mxu0 0
    %145 = vmatpush1.bf16.msra.mxu0 %v127
    %146 = vmatprep.subr.bf16.mxu0 0
    %147 = vmatpush1.bf16.msra.mxu0 %v128
    %148 = vmatprep.subr.bf16.mxu0 0
    %149 = vmatpush1.bf16.msra.mxu0 %v129
    %150 = vmatprep.subr.bf16.mxu0 0
    %151 = vmatpush1.bf16.msra.mxu0 %v130
    %152 = vmatprep.subr.bf16.mxu0 0
    %153 = vmatpush1.bf16.msra.mxu0 %v131
    %154 = vmatprep.subr.bf16.mxu0 0
    %155 = vmatpush1.bf16.msra.mxu0 %v132
    %156 = vmatprep.subr.bf16.mxu0 0
    %157 = vmatpush1.bf16.msra.mxu0 %v133
    %158 = vmatprep.subr.bf16.mxu0 0
    %159 = vmatpush1.bf16.msra.mxu0 0
    %160 = vmatprep.subr.bf16.mxu0 0
    %161 = vmatpush1.bf16.msra.mxu0 0
    %162 = vmatprep.subr.bf16.mxu0 0
    %163 = vmatpush1.bf16.msra.mxu0 0
    %164 = vmatprep.subr.bf16.mxu0 0
    %165 = vmatpush1.bf16.msra.mxu0 0
    %166 = vmatprep.subr.bf16.mxu0 0
    %167 = vmatpush1.bf16.msra.mxu0 0
    %168 = vmatprep.subr.bf16.mxu0 0
    %169 = vmatpush1.bf16.msra.mxu0 0
    %170 = vmatprep.subr.bf16.mxu0 0
    %171 = vmatpush1.bf16.msra.mxu0 0
    %172 = vmatprep.subr.bf16.mxu0 0
    %173 = vmatpush1.bf16.msra.mxu0 0
    %174 = vmatprep.mubr.bf16.mxu0 0
    %175 = vmatmul.mubr.bf16.gmra.mrb[0].mxu0 %v92
    %v176 = vpop.f32.mrb[0].mxu0
    %v177 = vadd.f32 %v86, %v176
    %v178 = vpop.f32.mrb[0].mxu0
    %v179 = vpop.f32.mrb[0].mxu0
    %v180 = vadd.f32 %v86, %v179
    %v181 = vpop.f32.mrb[0].mxu0
    %182 = vdwg.mxu0
    %v183 = vmax.f32 %v177, 0.0
    %v184 = vmax.f32 %v180, 0.0
    %v185 = vpack.c.bf16 %v184, %v183
    %v186 = vld [vmem:[#allocation7] sm:$0xf]
    %v187 = vld [vmem:[#allocation7 + $0x4] sm:$0xf]
    %v188 = vld [vmem:[#allocation7 + $0x8] sm:$0xf]
    %v189 = vld [vmem:[#allocation7 + $0xc] sm:$0xf]
    %v190 = vld [vmem:[#allocation7 + $0x10] sm:$0xf]
    %v191 = vld [vmem:[#allocation7 + $0x14] sm:$0xf]
    %v192 = vld [vmem:[#allocation7 + $0x18] sm:$0xf]
    %v193 = vld [vmem:[#allocation7 + $0x1c] sm:$0xf]
    %v194 = vld [vmem:[#allocation7 + $0x20] sm:$0xf]
    %v195 = vld [vmem:[#allocation7 + $0x24] sm:$0xf]
    %v196 = vld [vmem:[#allocation7 + $0x28] sm:$0xf]
    %v197 = vld [vmem:[#allocation7 + $0x2c] sm:$0xf]
    %v198 = vld [vmem:[#allocation7 + $0x30] sm:$0xf]
    %v199 = vld [vmem:[#allocation7 + $0x34] sm:$0xf]
    %v200 = vld [vmem:[#allocation7 + $0x38] sm:$0xf]
    %v201 = vld [vmem:[#allocation7 + $0x3c] sm:$0xf]
    %v202 = vld [vmem:[%s4] sm:$0x1]
    %v204 = vlaneseq
    %v205 = vshrl.u32 %v204, 7
    %v206 = vsub.s32 0, %v205
    %v207 = vrot.slane %v202, %v206
    %v225 = vunpack.c.l.b16 %v186
    %v226 = vunpack.c.l.b16 %v187
    %v227 = vunpack.c.l.b16 %v188
    %v228 = vunpack.c.l.b16 %v189
    %v229 = vunpack.c.l.b16 %v190
    %v230 = vunpack.c.l.b16 %v191
    %v231 = vunpack.c.l.b16 %v192
    %v232 = vunpack.c.l.b16 %v193
    %v233 = vunpack.c.l.b16 %v194
    %v234 = vunpack.c.l.b16 %v195
    %v235 = vunpack.c.l.b16 %v196
    %v236 = vunpack.c.l.b16 %v197
    %v237 = vunpack.c.l.b16 %v198
    %v238 = vunpack.c.l.b16 %v199
    %v239 = vunpack.c.l.b16 %v200
    %v240 = vunpack.c.l.b16 %v201
    %v241 = vpack.c.b16 %v226, %v225
    %v242 = vpack.c.b16 %v228, %v227
    %v243 = vpack.c.b16 %v230, %v229
    %v244 = vpack.c.b16 %v232, %v231
    %v245 = vpack.c.b16 %v234, %v233
    %v246 = vpack.c.b16 %v236, %v235
    %v247 = vpack.c.b16 %v238, %v237
    %v248 = vpack.c.b16 %v240, %v239
    %257 = vmatprep.subr.bf16.mxu0 0
    %258 = vmatpush1.bf16.msra.mxu0 %v241
    %259 = vmatprep.subr.bf16.mxu0 0
    %260 = vmatpush1.bf16.msra.mxu0 %v242
    %261 = vmatprep.subr.bf16.mxu0 0
    %262 = vmatpush1.bf16.msra.mxu0 %v243
    %263 = vmatprep.subr.bf16.mxu0 0
    %264 = vmatpush1.bf16.msra.mxu0 %v244
    %265 = vmatprep.subr.bf16.mxu0 0
    %266 = vmatpush1.bf16.msra.mxu0 %v245
    %267 = vmatprep.subr.bf16.mxu0 0
    %268 = vmatpush1.bf16.msra.mxu0 %v246
    %269 = vmatprep.subr.bf16.mxu0 0
    %270 = vmatpush1.bf16.msra.mxu0 %v247
    %271 = vmatprep.subr.bf16.mxu0 0
    %272 = vmatpush1.bf16.msra.mxu0 %v248
    %273 = vmatprep.subr.bf16.mxu0 0
    %274 = vmatpush1.bf16.msra.mxu0 0
    %275 = vmatprep.subr.bf16.mxu0 0
    %276 = vmatpush1.bf16.msra.mxu0 0
    %277 = vmatprep.subr.bf16.mxu0 0
    %278 = vmatpush1.bf16.msra.mxu0 0
    %279 = vmatprep.subr.bf16.mxu0 0
    %280 = vmatpush1.bf16.msra.mxu0 0
    %281 = vmatprep.subr.bf16.mxu0 0
    %282 = vmatpush1.bf16.msra.mxu0 0
    %283 = vmatprep.subr.bf16.mxu0 0
    %284 = vmatpush1.bf16.msra.mxu0 0
    %285 = vmatprep.subr.bf16.mxu0 0
    %286 = vmatpush1.bf16.msra.mxu0 0
    %287 = vmatprep.subr.bf16.mxu0 0
    %288 = vmatpush1.bf16.msra.mxu0 0
    %289 = vmatprep.mubr.bf16.mxu0 0
    %290 = vmatmul.mubr.bf16.gmra.mrb[0].mxu0 %v185
    %v291 = vpop.f32.mrb[0].mxu0
    %v292 = vadd.f32 %v207, %v291
    %v293 = vpop.f32.mrb[0].mxu0
    %v294 = vpop.f32.mrb[0].mxu0
    %v295 = vadd.f32 %v207, %v294
    %v296 = vpop.f32.mrb[0].mxu0
    %297 = vdwg.mxu0
    %298 = vst [vmem:[#allocation8] sm:$0xff] %v292
    %299 = vst [vmem:[#allocation8 + $0x8] sm:$0xff] %v295
    // Predicated region
    $region34: #{tpu_custom_call.1} parent=1 // pred_check
      _
    $region35: #{tpu_custom_call.1} parent=1 // pred_check_branch
      %301 = sbr.rel (0) target = $region37
    $region36: #{tpu_custom_call.1} parent=1 // pred_region
      %s303 = ssub.s32 256, 256
      %304 = vsyncadd [#allocation4], %s303
      %s305 = sshll.u32 [#allocation8], 4
      %s306 = int_to_ptr.vmem [resolvable:$true] %s305
      %311 = dma.vmem_to_hbm [thread:$0]  %s306, 256, %s5, [#allocation4], 128, 128, 8
    $region37: #{tpu_custom_call.1} parent=1 // pred_fallthru
      _
    // Predicated region
    $region38: #{tpu_custom_call.1} parent=1 // pred_check
      _
    $region39: #{tpu_custom_call.1} parent=1 // pred_check_branch
      %313 = sbr.rel (0) target = $region41
    $region40: #{tpu_custom_call.1} parent=1 // pred_region
      %314 = dma.done [#allocation4], 256
    $region41: #{tpu_custom_call.1} parent=1 // pred_fallthru
      _
    %315 = vsyncpa [#allocation3], 1
    %316 = vsyncpa [#allocation6], 1
    %317 = vsyncpa [#allocation4], 1

</llo_original>
